<compile_context>
chip_gen: v7x
topology: tpu7x:2x2x1
jax: 0.10.0
libtpu: 0.0.40
codegen_flags: <defaults>
</compile_context>

<pallas_src>
import math

import numpy as np

import jax
import jax.numpy as jnp
from jax.experimental import pallas as pl
from jax.experimental.pallas import tpu as pltpu


# -----------------------------------------------------------------------------
# Pallas kernel: grouped-ROI weighted reduction (ROI-align hot path as a
# matmul), tiled over the flattened spatial axis S, accumulating directly into
# the resident f32 output block.
# -----------------------------------------------------------------------------
def _roi_pool_kernel(chunk_bidx_ref, feat_ref, w_ref, out_ref):
    # feat_ref: (1, C, tS)   bf16 -- feature tile of this chunk's batch element
    # w_ref:    (GR*P, tS)   bf16 -- trilinear weights for GR ROIs (P rows each)
    # out_ref:  (GR*P, C)    f32  -- resident across k; accumulated in place
    k = pl.program_id(1)

    @pl.when(k == 0)
    def _():
        out_ref[...] = jnp.zeros_like(out_ref)

    # (GR*P, tS) x (C, tS)^T -> (GR*P, C); bf16 operands, f32 MXU accumulation.
    out_ref[...] += jax.lax.dot_general(
        w_ref[...],
        feat_ref[0],
        dimension_numbers=(((1,), (1,)), ((), ())),
        preferred_element_type=jnp.float32,
    )


# -----------------------------------------------------------------------------
# Tiling / budgeting helpers (generation aware).
# -----------------------------------------------------------------------------
def _vmem_budget():
    """Returns (tile_budget_bytes, vmem_limit_bytes) sized per TPU generation."""
    try:
        cap = int(pltpu.get_tpu_info().vmem_capacity_bytes)
    except Exception:  # no TPU info available -> assume the smallest (v7x) VMEM
        cap = 64 * 1024 * 1024
    if cap >= 96 * 1024 * 1024:          # v5e / v6e: 128 MiB physical VMEM
        return 28 * 1024 * 1024, 64 * 1024 * 1024
    return 14 * 1024 * 1024, 48 * 1024 * 1024   # v7x: 64 MiB physical VMEM


def _choose_row_group(P, target_m=256):
    """ROIs per chunk (GR) s.t. GR*P >= target_m and GR*P % 8 == 0."""
    g = 8 // math.gcd(P, 8)                      # GR multiple making GR*P % 8 == 0
    gr = g * max(1, -(-target_m // (P * g)))
    return int(gr)


def _choose_s_tile(C, m_rows, S, tile_budget_bytes):
    """128-aligned S tile keeping the double-buffered bf16 feat+weight streams
    plus the double-buffered f32 out block within the per-chip budget."""
    per_s_bytes = 2 * (C + m_rows) * 2           # 2 pipeline buffers, both streams
    fixed_bytes = 2 * m_rows * C * 4             # double-buffered f32 out block
    avail = max(tile_budget_bytes - fixed_bytes, 512 * 1024)
    ts = max(128, (avail // per_s_bytes) // 128 * 128)
    ts = min(ts, -(-S // 128) * 128)
    s_pad = -(-S // ts) * ts
    return int(ts), int(s_pad)


def _group_rois_by_batch(batch_idx_np, B, gr):
    """Host-side grouping of concrete ROI batch indices into contiguous,
    GR-padded per-batch segments.  Returns (roi_slot[N], chunk_bidx[num_chunks])."""
    # TODO(synk): under jit this needs a static per-batch ROI capacity instead
    # of concrete batch indices; the demo/eager path computes it exactly.
    n = batch_idx_np.shape[0]
    counts = np.bincount(batch_idx_np, minlength=B)[:B]
    padded = ((counts + gr - 1) // gr) * gr
    starts = np.cumsum(counts) - counts          # batch start in sorted order
    offsets = np.cumsum(padded) - padded         # batch start in padded layout
    order = np.argsort(batch_idx_np, kind="stable")
    sorted_b = batch_idx_np[order]
    rank_sorted = np.arange(n) - starts[sorted_b]
    slot = np.empty(n, dtype=np.int64)
    slot[order] = offsets[sorted_b] + rank_sorted
    chunk_bidx = np.repeat(np.arange(B, dtype=np.int32), (padded // gr).astype(np.int64))
    return slot, chunk_bidx


# -----------------------------------------------------------------------------
# Pallas call wrapper.
# -----------------------------------------------------------------------------
def _roi_pool_pallas(feat_flat, weight_rows, chunk_bidx, m_rows, tS, vmem_limit_bytes):
    """feat_flat: (B, C, S_pad) bf16; weight_rows: (num_chunks*m_rows, S_pad) bf16;
    chunk_bidx: (num_chunks,) int32 (scalar-prefetched).  Returns (rows, C) f32."""
    B, C, S_pad = feat_flat.shape
    total_rows, _ = weight_rows.shape
    assert total_rows % m_rows == 0 and S_pad % tS == 0
    num_chunks = total_rows // m_rows
    num_k = S_pad // tS

    grid_spec = pltpu.PrefetchScalarGridSpec(
        num_scalar_prefetch=1,
        grid=(num_chunks, num_k),                # reduction (S) axis last
        in_specs=[
            # Feature tile of the batch element this chunk points at.  With
            # per-batch grouping, consecutive chunks of the same batch (and a
            # single S tile) reuse the resident block -> DMA skipped.
            pl.BlockSpec((1, C, tS), lambda m, k, cb: (cb[m], 0, k)),
            pl.BlockSpec((m_rows, tS), lambda m, k, cb: (m, k)),
        ],
        out_specs=pl.BlockSpec((m_rows, C), lambda m, k, cb: (m, 0)),
    )

    return pl.pallas_call(
        _roi_pool_kernel,
        out_shape=jax.ShapeDtypeStruct((total_rows, C), jnp.float32),
        grid_spec=grid_spec,
        compiler_params=pltpu.CompilerParams(
            dimension_semantics=("parallel", "arbitrary"),
            vmem_limit_bytes=vmem_limit_bytes,
        ),
    )(chunk_bidx, feat_flat, weight_rows)


# -----------------------------------------------------------------------------
# Glue: build per-ROI trilinear interpolation weights (same clamping rules as
# the reference roi_align CUDA bilinear_interpolate, extended to 3-D), scattered
# directly into their grouped row slots.  Emitted as bf16.
# -----------------------------------------------------------------------------
def _interp_1d(coord, size):
    c = jnp.maximum(coord, 0.0)
    lo = jnp.floor(c).astype(jnp.int32)
    top = lo >= size - 1
    lo = jnp.where(top, size - 1, lo)
    hi = jnp.where(top, size - 1, lo + 1)
    c = jnp.where(top, lo.astype(jnp.float32), c)
    frac = c - lo.astype(jnp.float32)
    return lo, hi, 1.0 - frac, frac


def _build_roi_weights(rois, H, W, Z, PH, PW, PZ, spatial_scale, sampling_ratio,
                       s_pad, row_slots, num_rows):
    """Returns a (num_rows*P, s_pad) bf16 weight matrix where ROI i occupies
    rows [row_slots[i]*P, (row_slots[i]+1)*P); unused rows stay zero."""
    assert sampling_ratio > 0, "static shapes require sampling_ratio > 0"
    sr = int(sampling_ratio)
    N = rois.shape[0]
    P = PH * PW * PZ

    rois = rois.astype(jnp.float32)
    cx = rois[:, 1] * spatial_scale
    cy = rois[:, 2] * spatial_scale
    cz = rois[:, 3] * spatial_scale
    rw = jnp.maximum(rois[:, 4] * spatial_scale, 1.0)
    rh = jnp.maximum(rois[:, 5] * spatial_scale, 1.0)
    rz = jnp.maximum(rois[:, 6] * spatial_scale, 1.0)
    theta = rois[:, 7]

    r = lambda v: v.reshape(N, 1, 1, 1, 1, 1, 1)
    ph = jnp.arange(PH, dtype=jnp.float32).reshape(1, PH, 1, 1, 1, 1, 1)
    pw = jnp.arange(PW, dtype=jnp.float32).reshape(1, 1, PW, 1, 1, 1, 1)
    pz = jnp.arange(PZ, dtype=jnp.float32).reshape(1, 1, 1, PZ, 1, 1, 1)
    iy = jnp.arange(sr, dtype=jnp.float32).reshape(1, 1, 1, 1, sr, 1, 1)
    ix = jnp.arange(sr, dtype=jnp.float32).reshape(1, 1, 1, 1, 1, sr, 1)
    iz = jnp.arange(sr, dtype=jnp.float32).reshape(1, 1, 1, 1, 1, 1, sr)

    bh, bw, bz = r(rh / PH), r(rw / PW), r(rz / PZ)
    yy = -r(rh) / 2.0 + (ph + (iy + 0.5) / sr) * bh
    xx = -r(rw) / 2.0 + (pw + (ix + 0.5) / sr) * bw
    zz = -r(rz) / 2.0 + (pz + (iz + 0.5) / sr) * bz

    cos_t, sin_t = r(jnp.cos(theta)), r(jnp.sin(theta))
    # rotation in the (x, y) image plane; z unrotated
    x = xx * cos_t + yy * sin_t + r(cx)
    y = yy * cos_t - xx * sin_t + r(cy)
    z = zz + r(cz)

    full = (N, PH, PW, PZ, sr, sr, sr)
    x = jnp.broadcast_to(x, full)
    y = jnp.broadcast_to(y, full)
    z = jnp.broadcast_to(z, full)

    valid = (
        (y >= -1.0) & (y <= H) & (x >= -1.0) & (x <= W) & (z >= -1.0) & (z <= Z)
    )

    y_lo, y_hi, wy_lo, wy_hi = _interp_1d(y, H)
    x_lo, x_hi, wx_lo, wx_hi = _interp_1d(x, W)
    z_lo, z_hi, wz_lo, wz_hi = _interp_1d(z, Z)

    y_idx = jnp.stack([y_lo, y_lo, y_lo, y_lo, y_hi, y_hi, y_hi, y_hi], axis=-1)
    x_idx = jnp.stack([x_lo, x_lo, x_hi, x_hi, x_lo, x_lo, x_hi, x_hi], axis=-1)
    z_idx = jnp.stack([z_lo, z_hi, z_lo, z_hi, z_lo, z_hi, z_lo, z_hi], axis=-1)
    cw = jnp.stack(
        [
            wy_lo * wx_lo * wz_lo, wy_lo * wx_lo * wz_hi,
            wy_lo * wx_hi * wz_lo, wy_lo * wx_hi * wz_hi,
            wy_hi * wx_lo * wz_lo, wy_hi * wx_lo * wz_hi,
            wy_hi * wx_hi * wz_lo, wy_hi * wx_hi * wz_hi,
        ],
        axis=-1,
    )
    cw = cw * valid[..., None].astype(jnp.float32) / float(sr ** 3)

    s_idx = y_idx * (W * Z) + x_idx * Z + z_idx
    p_grid = (
        jnp.arange(PH)[:, None, None] * (PW * PZ)
        + jnp.arange(PW)[None, :, None] * PZ
        + jnp.arange(PZ)[None, None, :]
    )
    p_idx = jnp.broadcast_to(
        p_grid.reshape(1, PH, PW, PZ, 1, 1, 1, 1), s_idx.shape
    )
    slot_b = jnp.broadcast_to(
        row_slots.astype(jnp.int32).reshape(N, 1, 1, 1, 1, 1, 1, 1), s_idx.shape
    )
    row_idx = slot_b * P + p_idx

    # Scatter-add in f32 (corner/sample collisions), then cast once to bf16.
    # TODO(synk): replace this dense scatter with in-kernel per-tile weight
    #             generation to remove the HBM round-trip prologue.
    weights = jnp.zeros((num_rows * P, s_pad), jnp.float32).at[
        row_idx.reshape(-1), s_idx.reshape(-1)
    ].add(cw.reshape(-1))
    return weights.astype(jnp.bfloat16)


# -----------------------------------------------------------------------------
# Public functional op + module wrapper (mirrors the PyTorch module)
# -----------------------------------------------------------------------------
def roi_align_rotated_3d(input_dense, rois, output_size, spatial_scale,
                         sampling_ratio):
    """input_dense: [B, C, H, W, Z];  rois: [N, 8];  returns [N, C, PH, PW, PZ]."""
    B, C, H, W, Z = input_dense.shape
    PH, PW, PZ = output_size
    N = rois.shape[0]
    P = PH * PW * PZ
    S = H * W * Z

    if N == 0:
        return jnp.zeros((0, C, PH, PW, PZ), input_dense.dtype)

    gr = _choose_row_group(P)                    # ROIs per chunk
    m_rows = gr * P                              # MXU M per grid step (>= 256)

    tile_budget, vmem_limit = _vmem_budget()
    tS, S_pad = _choose_s_tile(C, m_rows, S, tile_budget)

    # Group ROIs by batch element on the host (concrete batch indices).
    batch_idx_np = np.clip(
        np.asarray(jax.device_get(rois[:, 0])).astype(np.int32), 0, B - 1
    )
    roi_slot_np, chunk_bidx_np = _group_rois_by_batch(batch_idx_np, B, gr)
    num_chunks = int(chunk_bidx_np.shape[0])
    num_rows = num_chunks * gr                   # padded ROI count

    # bf16 operand streams; accumulation stays f32 inside the kernel.
    feat_flat = input_dense.reshape(B, C, S).astype(jnp.bfloat16)
    if S_pad != S:
        feat_flat = jnp.pad(feat_flat, ((0, 0), (0, 0), (0, S_pad - S)))

    row_slots = jnp.asarray(roi_slot_np, dtype=jnp.int32)
    # Weights are scattered directly into their grouped slots -> no post-hoc
    # gather of the big (rows, S_pad) tensor.
    weight_rows = _build_roi_weights(
        rois, H, W, Z, PH, PW, PZ, spatial_scale, sampling_ratio,
        S_pad, row_slots, num_rows
    )
    chunk_bidx = jnp.asarray(chunk_bidx_np, dtype=jnp.int32)

    out_rows = _roi_pool_pallas(
        feat_flat, weight_rows, chunk_bidx, m_rows, tS, vmem_limit
    )                                            # (num_rows*P, C), f32
    out = out_rows.reshape(num_rows, P, C)[row_slots]   # (N, P, C), original order
    out = jnp.transpose(out, (0, 2, 1)).reshape(N, C, PH, PW, PZ)
    return out.astype(input_dense.dtype)


class ROIAlignRotated3D:
    """JAX/Pallas port of maskrcnn_benchmark ROIAlignRotated3D (forward only)."""

    def __init__(self, output_size, spatial_scale, sampling_ratio):
        self.output_size = output_size
        self.spatial_scale = spatial_scale
        self.sampling_ratio = sampling_ratio

    def __call__(self, input_dense, rois_3d):
        return roi_align_rotated_3d(
            input_dense, rois_3d, self.output_size, self.spatial_scale,
            self.sampling_ratio
        )

    def __repr__(self):
        return (f"ROIAlignRotated3D(output_size={self.output_size}, "
                f"spatial_scale={self.spatial_scale}, "
                f"sampling_ratio={self.sampling_ratio})")


if __name__ == "__main__":
    key = jax.random.PRNGKey(0)
    B, C, H, W, Z = 2, 128, 8, 8, 4
    output_size = (4, 4, 2)          # (pooled_h, pooled_w, pooled_z)
    spatial_scale = 0.5
    sampling_ratio = 2
    N = 5                            # number of ROIs

    k1, k2, k3, k4, k5 = jax.random.split(key, 5)
    feat = jax.random.normal(k1, (B, C, H, W, Z), jnp.float32)

    batch_ind = jax.random.randint(k2, (N,), 0, B).astype(jnp.float32)
    centers = jax.random.uniform(k3, (N, 3), minval=2.0, maxval=14.0)  # cx, cy, cz
    sizes = jax.random.uniform(k4, (N, 3), minval=2.0, maxval=10.0)    # rw, rh, rz
    theta = jax.random.uniform(k5, (N,), minval=-math.pi, maxval=math.pi)
    rois = jnp.concatenate(
        [batch_ind[:, None], centers, sizes, theta[:, None]], axis=1
    ).astype(jnp.float32)

    module = ROIAlignRotated3D(output_size, spatial_scale, sampling_ratio)
    out = jax.block_until_ready(module(feat, rois))

    # Sanity check against a plain-JAX einsum using the same bf16 operands and
    # f32 accumulation (independent of the grouping/padding path).
    PH, PW, PZ = output_size
    P = PH * PW * PZ
    S = H * W * Z
    w_ref_rows = _build_roi_weights(
        rois, H, W, Z, PH, PW, PZ, spatial_scale, sampling_ratio,
        S, jnp.arange(N, dtype=jnp.int32), N
    ).reshape(N, P, S)
    feat_flat = feat.reshape(B, C, S).astype(jnp.bfloat16)
    bidx = jnp.clip(rois[:, 0].astype(jnp.int32), 0, B - 1)
    ref = jnp.einsum(
        "nps,ncs->ncp", w_ref_rows, feat_flat[bidx],
        preferred_element_type=jnp.float32,
    ).reshape(N, C, PH, PW, PZ)

    assert out.shape == (N, C, PH, PW, PZ)
    err = float(jnp.max(jnp.abs(out.astype(jnp.float32) - ref)))
    assert jnp.allclose(out.astype(jnp.float32), ref, atol=2e-2, rtol=2e-2), err

    print("KERNEL_OK")
</pallas_src>

<mosaic_0001>
module attributes {stable_mosaic.version = 11 : i64} {
  func.func @_roi_pool_kernel(%arg0: i32, %arg1: i32, %arg2: memref<2xi32, #tpu.memory_space<smem>>, %arg3: memref<1x128x256xbf16, #tpu.memory_space<vmem>>, %arg4: memref<256x256xbf16, #tpu.memory_space<vmem>>, %arg5: memref<256x128xf32, #tpu.memory_space<vmem>>) attributes {dimension_semantics = [#tpu.dimension_semantics<parallel>, #tpu.dimension_semantics<arbitrary>], iteration_bounds = array<i64: 2, 1>, scalar_prefetch = 1 : i64, scratch_operands = 0 : i64, tpu.core_type = #tpu.core_type<tc>, window_params = [{transform_indices = @transform_0, window_bounds = array<i64: 1, 128, 256>}, {transform_indices = @transform_1, window_bounds = array<i64: 256, 256>}, {transform_indices = @transform_2, window_bounds = array<i64: 256, 128>}]} {
    %c0_i32 = arith.constant 0 : i32
    %0 = arith.cmpi eq, %arg1, %c0_i32 : i32
    %1 = arith.extui %0 : i1 to i32
    %c0_i32_0 = arith.constant 0 : i32
    %2 = arith.cmpi ne, %1, %c0_i32_0 : i32
    scf.if %2 {
      %cst_9 = arith.constant 0.000000e+00 : f32
      %10 = vector.broadcast %cst_9 : f32 to vector<256x128xf32>
      %c0_10 = arith.constant 0 : index
      %c0_11 = arith.constant 0 : index
      %11 = vector.load %arg5[%c0_10, %c0_11] : memref<256x128xf32, #tpu.memory_space<vmem>>, vector<256x128xf32>
      tpu.vector_store %arg5[%c0_10, %c0_11], %10 {strides = array<i32>} : memref<256x128xf32, #tpu.memory_space<vmem>>, vector<256x128xf32>,
    } else {
    }
    %c0 = arith.constant 0 : index
    %c0_1 = arith.constant 0 : index
    %3 = vector.load %arg5[%c0, %c0_1] : memref<256x128xf32, #tpu.memory_space<vmem>>, vector<256x128xf32>
    %c0_2 = arith.constant 0 : index
    %c0_3 = arith.constant 0 : index
    %4 = vector.load %arg4[%c0_2, %c0_3] : memref<256x256xbf16, #tpu.memory_space<vmem>>, vector<256x256xbf16>
    %c0_4 = arith.constant 0 : index
    %c0_5 = arith.constant 0 : index
    %c0_6 = arith.constant 0 : index
    %5 = vector.load %arg3[%c0_4, %c0_5, %c0_6] : memref<1x128x256xbf16, #tpu.memory_space<vmem>>, vector<1x128x256xbf16>
    %6 = vector.shape_cast %5 : vector<1x128x256xbf16> to vector<128x256xbf16>
    %cst = arith.constant dense<0.000000e+00> : vector<256x128xf32>
    %7 = tpu.matmul %4, %6, %cst {dimension_numbers = #tpu.dot_dimension_numbers<[1], [1], [0], [0], [0, 0, 1, 0], [], []>} : vector<256x256xbf16>, vector<128x256xbf16>, vector<256x128xf32> -> vector<256x128xf32>
    %8 = arith.addf %3, %7 : vector<256x128xf32>
    %c0_7 = arith.constant 0 : index
    %c0_8 = arith.constant 0 : index
    %9 = vector.load %arg5[%c0_7, %c0_8] : memref<256x128xf32, #tpu.memory_space<vmem>>, vector<256x128xf32>
    tpu.vector_store %arg5[%c0_7, %c0_8], %8 {strides = array<i32>} : memref<256x128xf32, #tpu.memory_space<vmem>>, vector<256x128xf32>,
    return
  }
  func.func @transform_0(%arg0: i32, %arg1: i32, %arg2: memref<2xi32, #tpu.memory_space<smem>>) -> (i32, i32, i32) {
    %0 = arith.index_cast %arg0 : i32 to index
    %1 = memref.load %arg2[%0] : memref<2xi32, #tpu.memory_space<smem>>
    %c0_i32 = arith.constant 0 : i32
    %c0_i32_0 = arith.constant 0 : i32
    return %1, %c0_i32, %arg1 : i32, i32, i32
  }
  func.func @transform_1(%arg0: i32, %arg1: i32, %arg2: memref<2xi32, #tpu.memory_space<smem>>) -> (i32, i32) {
    %c0_i32 = arith.constant 0 : i32
    return %arg0, %arg1 : i32, i32
  }
  func.func @transform_2(%arg0: i32, %arg1: i32, %arg2: memref<2xi32, #tpu.memory_space<smem>>) -> (i32, i32) {
    %c0_i32 = arith.constant 0 : i32
    %c0_i32_0 = arith.constant 0 : i32
    return %arg0, %c0_i32 : i32, i32
  }
}

</mosaic_0001>

<llo_original>
// kernel: tpu_custom_call.1
$region0: #{tpu_custom_call.1}
  #allocation0 [shape = 'u32[]', space=smem, size = 0x4, offset = 0x4, fixed_abs, tag = 'smem constant byte address 0x4 - core index']
  #allocation1 [shape = 'u32[144,128]{1,0:T(1,128)}', space=vmem, size = 0x12000, scoped, tag = 'internal scratch']
  #allocation2 [shape = 's32[1]{0}', space=sflag, size = 0x4, scoped, tag = 'scoped memory for tpu_custom_call.1']
  #allocation3 [shape = 'u8[512]{0}', space=smem, size = 0x200, scoped, tag = 'prefetched SMEM operand 0']
  %s0 = inlined_call_operand.hbm [shape: s32[2], index: 0, kind: input, shape index: {}]
  %s1 = inlined_call_operand.hbm [shape: bf16[2,128,256], index: 1, kind: input, shape index: {}]
  %s2 = inlined_call_operand.hbm [shape: bf16[512,256], index: 2, kind: input, shape index: {}]
  %s3 = inlined_call_operand.hbm [shape: f32[512,128], index: 3, kind: output, shape index: {}]
  %s4 = sld [smem:[#allocation0]]
  $region53: #{tpu_custom_call.1} parent=0
    _
  %s6 = ssub.s32 1, %s4
  %s7 = scalar_select 0, %s6, %s4
  %9 = dma.hbm_to_smem %s0, 16, [#allocation3], [#allocation2]
  %10 = dma.done [#allocation2], 16
  %11 = sfence
  $region1: #{tpu_custom_call.1} parent=0
    #allocation4 [shape = 'u8[131072]{0}', space=vmem, size = 0x20000, scoped, tag = 'input window, operand 1']
    #allocation5 [shape = 's32[2]{0}', space=sflag, size = 0x8, scoped, tag = 'scoped memory for tpu_custom_call.1']
    #allocation6 [shape = 's32[2]{0}', space=sflag, size = 0x8, scoped, tag = 'scoped memory for tpu_custom_call.1']
    #allocation7 [shape = 'u8[262144]{0}', space=vmem, size = 0x40000, scoped, tag = 'input window, operand 2']
    #allocation8 [shape = 's32[2]{0}', space=sflag, size = 0x8, scoped, tag = 'scoped memory for tpu_custom_call.1']
    #allocation9 [shape = 'u8[262144]{0}', space=vmem, size = 0x40000, scoped, tag = 'output window, operand 0']
    %12 = vsyncpa [#allocation5], 0
    %s13 = scalar_lea.sflag [#allocation5], 1
    %14 = vsyncpa %s13, 0
    %15 = vsyncpa [#allocation8], 0
    %s16 = scalar_lea.sflag [#allocation8], 1
    %17 = vsyncpa %s16, 0
    %18 = vsyncpa [#allocation6], 0
    %s19 = scalar_lea.sflag [#allocation6], 1
    %20 = vsyncpa %s19, 0
    loop: start=0, step=1, limit=4
    $region2: #{tpu_custom_call.1} parent=1 // loop_pre_header
      _
    $region3: #{tpu_custom_call.1} parent=1 // loop_header
      %s22 = sphi 0, %s26
      %p23 = scmp.ge.s32.totalorder %s22, 4
      %s29 = sphi 0, %s41
      %s30 = sphi 0, %s37
      %s31 = sphi 0, %s29
      %s32 = sphi 0, %s30
      %s33 = sphi 0, %s31
      %s34 = sphi 0, %s32
      %s48 = sphi 0, %s50
      %s51 = sphi 0, %s48
      %s52 = sphi 0, %s51
      %s68 = sphi 0, %s52
      %s76 = sphi 0, %s78
      %s79 = sphi 0, %s76
      %s80 = sphi 0, %s79
      %s96 = sphi 0, %s80
      %s102 = sphi 0, %s104
      %s105 = sphi 0, %s102
      %s106 = sphi 0, %s105
      %s122 = sphi 0, %s106
    $region4: #{tpu_custom_call.1} parent=1 // loop_header_branch
      %25 = sbr.rel (%p23) target = $region8
    $region5: #{tpu_custom_call.1} parent=1 // loop_body
      %s27 = ssub.s32 %s22, 1
      %s28 = ssub.s32 %s22, 2
      %s35 = sadd.s32 1, %s30
      %p36 = scmp.ge.s32.totalorder %s35, 1
      %s37 = scalar_select %p36, 0, %s35
      %s38 = sadd.s32 1, %s29
      %s39 = scalar_select %p36, %s38, %s29
      %p40 = scmp.ge.s32.totalorder %s39, 2
      %s41 = scalar_select %p40, 0, %s39
      %s42 = sld [smem:[#allocation3 + %s29]]
      %s43 = sld [smem:[#allocation3 + %s41]]
      %s44 = ssub.s32 %s42, %s43
      %s45 = ssub.s32 %s30, %s37
      %s46 = sor.u32 %s44, %s45
      %p47 = scmp.eq.s32.totalorder %s46, 0
      %s49 = sadd.s32 %s48, 1
      %s50 = scalar_select %p47, %s48, %s49
      %p53 = pneg %p47
      %p54 = scmp.eq.s32.totalorder %s22, 1
      %p55 = por %p53, %p54
      %p56 = scmp.ne.s32.totalorder %s48, %s51
      %p57 = scmp.eq.s32.totalorder %s22, 0
      %p58 = por %p56, %p57
      %p59 = scmp.ne.s32.totalorder %s48, %s51
      %p60 = scmp.eq.s32.totalorder %s27, 1
      %p61 = por %p59, %p60
      %p62 = scmp.ne.s32.totalorder %s51, %s52
      %p63 = scmp.eq.s32.totalorder %s27, 0
      %p64 = por %p62, %p63
      %p65 = scmp.ne.s32.totalorder %s51, %s52
      %p66 = scmp.eq.s32.totalorder %s28, 1
      %p67 = por %p65, %p66
      %p69 = scmp.ne.s32.totalorder %s52, %s68
      %p70 = scmp.eq.s32.totalorder %s28, 0
      %p71 = por %p69, %p70
      %s72 = ssub.s32 %s29, %s41
      %s73 = ssub.s32 %s30, %s37
      %s74 = sor.u32 %s72, %s73
      %p75 = scmp.eq.s32.totalorder %s74, 0
      %s77 = sadd.s32 %s76, 1
      %s78 = scalar_select %p75, %s76, %s77
      %p81 = pneg %p75
      %p82 = scmp.eq.s32.totalorder %s22, 1
      %p83 = por %p81, %p82
      %p84 = scmp.ne.s32.totalorder %s76, %s79
      %p85 = scmp.eq.s32.totalorder %s22, 0
      %p86 = por %p84, %p85
      %p87 = scmp.ne.s32.totalorder %s76, %s79
      %p88 = scmp.eq.s32.totalorder %s27, 1
      %p89 = por %p87, %p88
      %p90 = scmp.ne.s32.totalorder %s79, %s80
      %p91 = scmp.eq.s32.totalorder %s27, 0
      %p92 = por %p90, %p91
      %p93 = scmp.ne.s32.totalorder %s79, %s80
      %p94 = scmp.eq.s32.totalorder %s28, 1
      %p95 = por %p93, %p94
      %p97 = scmp.ne.s32.totalorder %s80, %s96
      %p98 = scmp.eq.s32.totalorder %s28, 0
      %p99 = por %p97, %p98
      %s100 = ssub.s32 %s29, %s41
      %p101 = scmp.eq.s32.totalorder %s100, 0
      %s103 = sadd.s32 %s102, 1
      %s104 = scalar_select %p101, %s102, %s103
      %p107 = pneg %p101
      %p108 = scmp.eq.s32.totalorder %s22, 1
      %p109 = por %p107, %p108
      %p110 = scmp.ne.s32.totalorder %s102, %s105
      %p111 = scmp.eq.s32.totalorder %s22, 0
      %p112 = por %p110, %p111
      %p113 = scmp.ne.s32.totalorder %s102, %s105
      %p114 = scmp.eq.s32.totalorder %s27, 1
      %p115 = por %p113, %p114
      %p116 = scmp.ne.s32.totalorder %s105, %s106
      %p117 = scmp.eq.s32.totalorder %s27, 0
      %p118 = por %p116, %p117
      %p119 = scmp.ne.s32.totalorder %s105, %s106
      %p120 = scmp.eq.s32.totalorder %s28, 1
      %p121 = por %p119, %p120
      %p123 = scmp.ne.s32.totalorder %s106, %s122
      %p124 = scmp.eq.s32.totalorder %s28, 0
      %p125 = por %p123, %p124
      %p126 = scmp.le.s32.totalorder 1, %s22
      %p127 = scmp.lt.s32.totalorder %s22, 3
      %p128 = pnand %p126, %p127
      %p129 = pneg %p128
      // Predicated region
      $region9: #{tpu_custom_call.1} parent=5 // pred_check
        _
      $region10: #{tpu_custom_call.1} parent=5 // pred_check_branch
        %131 = sbr.rel (%p128) target = $region12
      $region11: #{tpu_custom_call.1} parent=5 // pred_region
        %s132 = ssub.s32 %s22, 1
      $region12: #{tpu_custom_call.1} parent=5 // pred_fallthru
        _
      %p133 = scmp.lt.s32.totalorder %s22, 2
      // Predicated region
      $region13: #{tpu_custom_call.1} parent=5 // pred_check
        %p134 = pneg %p133
      $region14: #{tpu_custom_call.1} parent=5 // pred_check_branch
        %136 = sbr.rel (%p134) target = $region16
      $region15: #{tpu_custom_call.1} parent=5 // pred_region
        // Predicated region
        $region17: #{tpu_custom_call.1} parent=15 // pred_check
          %p137 = pneg %p58
        $region18: #{tpu_custom_call.1} parent=15 // pred_check_branch
          %139 = sbr.rel (%p137) target = $region20
        $region19: #{tpu_custom_call.1} parent=15 // pred_region
          %s140 = sand.u32 %s48, 1
          %s141 = scalar_lea.sflag [#allocation5], %s140
          %s142 = sand.u32 %s48, 1
          %s143 = smul.addr %s142, 128
          %s144 = scalar_lea.vmem [#allocation4], %s143
          %s145 = sld [smem:[#allocation3 + %s29]]
          %s146 = smul.u32 2, %s30
          %s148 = ssub.s32 2048, 2048
          %149 = vsyncadd %s141, %s148
          %s150 = smul.addr %s145, 32
          %s151 = sadd.s32 %s146, %s150
          %s152 = smul.addr %s151, 64
          %s153 = scalar_lea.hbm %s1, %s152
          %s154 = sshll.u32 %s144, 4
          %s155 = int_to_ptr.vmem [resolvable:$true] %s154
          %160 = dma.hbm_to_vmem [thread:$0]  %s153, 2048, %s155, %s141, 128, 128, 8
        $region20: #{tpu_custom_call.1} parent=15 // pred_fallthru
          _
        // Predicated region
        $region21: #{tpu_custom_call.1} parent=15 // pred_check
          %p161 = pneg %p86
        $region22: #{tpu_custom_call.1} parent=15 // pred_check_branch
          %163 = sbr.rel (%p161) target = $region24
        $region23: #{tpu_custom_call.1} parent=15 // pred_region
          %s164 = sand.u32 %s76, 1
          %s165 = scalar_lea.sflag [#allocation8], %s164
          %s166 = sand.u32 %s76, 1
          %s167 = smul.addr %s166, 256
          %s168 = scalar_lea.vmem [#allocation7], %s167
          %s169 = smul.u32 32, %s29
          %s170 = smul.u32 2, %s30
          %s172 = ssub.s32 4096, 4096
          %173 = vsyncadd %s165, %s172
          %s174 = smul.addr %s169, 2
          %s175 = sadd.s32 %s170, %s174
          %s176 = smul.addr %s175, 64
          %s177 = scalar_lea.hbm %s2, %s176
          %s178 = sshll.u32 %s168, 4
          %s179 = int_to_ptr.vmem [resolvable:$true] %s178
          %184 = dma.hbm_to_vmem [thread:$0]  %s177, 4096, %s179, %s165, 128, 128, 8
        $region24: #{tpu_custom_call.1} parent=15 // pred_fallthru
          _
      $region16: #{tpu_custom_call.1} parent=5 // pred_fallthru
        _
      %p185 = scmp.le.s32.totalorder 1, %s22
      %p186 = scmp.lt.s32.totalorder %s22, 3
      %p187 = pnand %p185, %p186
      %p188 = pneg %p187
      // Predicated region
      $region25: #{tpu_custom_call.1} parent=5 // pred_check
        _
      $region26: #{tpu_custom_call.1} parent=5 // pred_check_branch
        %190 = sbr.rel (%p187) target = $region28
      $region27: #{tpu_custom_call.1} parent=5 // pred_region
        %s191 = ssub.s32 %s22, 1
        %s192 = sand.u32 %s51, 1
        %s193 = scalar_lea.sflag [#allocation5], %s192
        %s194 = sand.u32 %s51, 1
        %s195 = smul.addr %s194, 128
        %s196 = scalar_lea.vmem [#allocation4], %s195
        // Predicated region
        $region29: #{tpu_custom_call.1} parent=27 // pred_check
          %p197 = pneg %p64
        $region30: #{tpu_custom_call.1} parent=27 // pred_check_branch
          %199 = sbr.rel (%p197) target = $region32
        $region31: #{tpu_custom_call.1} parent=27 // pred_region
          %200 = dma.done %s193, 2048
        $region32: #{tpu_custom_call.1} parent=27 // pred_fallthru
          _
        %s201 = sand.u32 %s79, 1
        %s202 = scalar_lea.sflag [#allocation8], %s201
        %s203 = sand.u32 %s79, 1
        %s204 = smul.addr %s203, 256
        %s205 = scalar_lea.vmem [#allocation7], %s204
        // Predicated region
        $region33: #{tpu_custom_call.1} parent=27 // pred_check
          %p206 = pneg %p92
        $region34: #{tpu_custom_call.1} parent=27 // pred_check_branch
          %208 = sbr.rel (%p206) target = $region36
        $region35: #{tpu_custom_call.1} parent=27 // pred_region
          %209 = dma.done %s202, 4096
        $region36: #{tpu_custom_call.1} parent=27 // pred_fallthru
          _
        %s210 = sand.u32 %s51, 1
        %s211 = scalar_lea.sflag [#allocation5], %s210
        %s212 = sand.u32 %s51, 1
        %s213 = smul.addr %s212, 128
        %s214 = scalar_lea.vmem [#allocation4], %s213
        %p215 = pneg %p64
        %p216 = pneg %p61
        %s217 = sand.u32 %s79, 1
        %s218 = scalar_lea.sflag [#allocation8], %s217
        %s219 = sand.u32 %s79, 1
        %s220 = smul.addr %s219, 256
        %s221 = scalar_lea.vmem [#allocation7], %s220
        %p222 = pneg %p92
        %p223 = pneg %p89
        %p224 = pneg %p118
        %p225 = pneg %p115
        %s226 = sand.u32 %s105, 1
        %s227 = scalar_lea.sflag [#allocation6], %s226
        %s228 = sand.u32 %s105, 1
        %s229 = smul.addr %s228, 256
        %s230 = scalar_lea.vmem [#allocation9], %s229
        %s231 = sld [smem:[#allocation3 + %s31]]
        %s232 = smul.u32 2, %s32
        %s233 = smul.u32 32, %s31
        %s234 = smul.u32 2, %s32
        %s235 = smul.u32 32, %s31
        %p237 = scmp.eq.s32.totalorder %s32, 0
        // Predicated region
        $region37: #{tpu_custom_call.1} parent=27 // pred_check
          %p238 = pneg %p237
        $region38: #{tpu_custom_call.1} parent=27 // pred_check_branch
          %240 = sbr.rel (%p238) target = $region40
        $region39: #{tpu_custom_call.1} parent=27 // pred_region
          %241 = vst [vmem:[%s230] sm:$0xff] 0.0
          %242 = vst [vmem:[%s230 + $0x8] sm:$0xff] 0.0
          %243 = vst [vmem:[%s230 + $0x10] sm:$0xff] 0.0
          %244 = vst [vmem:[%s230 + $0x18] sm:$0xff] 0.0
          %245 = vst [vmem:[%s230 + $0x20] sm:$0xff] 0.0
          %246 = vst [vmem:[%s230 + $0x28] sm:$0xff] 0.0
          %247 = vst [vmem:[%s230 + $0x30] sm:$0xff] 0.0
          %248 = vst [vmem:[%s230 + $0x38] sm:$0xff] 0.0
          %249 = vst [vmem:[%s230 + $0x40] sm:$0xff] 0.0
          %250 = vst [vmem:[%s230 + $0x48] sm:$0xff] 0.0
          %251 = vst [vmem:[%s230 + $0x50] sm:$0xff] 0.0
          %252 = vst [vmem:[%s230 + $0x58] sm:$0xff] 0.0
          %253 = vst [vmem:[%s230 + $0x60] sm:$0xff] 0.0
          %254 = vst [vmem:[%s230 + $0x68] sm:$0xff] 0.0
          %255 = vst [vmem:[%s230 + $0x70] sm:$0xff] 0.0
          %256 = vst [vmem:[%s230 + $0x78] sm:$0xff] 0.0
          %257 = vst [vmem:[%s230 + $0x80] sm:$0xff] 0.0
          %258 = vst [vmem:[%s230 + $0x88] sm:$0xff] 0.0
          %259 = vst [vmem:[%s230 + $0x90] sm:$0xff] 0.0
          %260 = vst [vmem:[%s230 + $0x98] sm:$0xff] 0.0
          %261 = vst [vmem:[%s230 + $0xa0] sm:$0xff] 0.0
          %262 = vst [vmem:[%s230 + $0xa8] sm:$0xff] 0.0
          %263 = vst [vmem:[%s230 + $0xb0] sm:$0xff] 0.0
          %264 = vst [vmem:[%s230 + $0xb8] sm:$0xff] 0.0
          %265 = vst [vmem:[%s230 + $0xc0] sm:$0xff] 0.0
          %266 = vst [vmem:[%s230 + $0xc8] sm:$0xff] 0.0
          %267 = vst [vmem:[%s230 + $0xd0] sm:$0xff] 0.0
          %268 = vst [vmem:[%s230 + $0xd8] sm:$0xff] 0.0
          %269 = vst [vmem:[%s230 + $0xe0] sm:$0xff] 0.0
          %270 = vst [vmem:[%s230 + $0xe8] sm:$0xff] 0.0
          %271 = vst [vmem:[%s230 + $0xf0] sm:$0xff] 0.0
          %272 = vst [vmem:[%s230 + $0xf8] sm:$0xff] 0.0
        $region40: #{tpu_custom_call.1} parent=27 // pred_fallthru
          _
        %v273 = vld [vmem:[%s230] sm:$0xff]
        %v274 = vld [vmem:[%s230 + $0x8] sm:$0xff]
        %v275 = vld [vmem:[%s230 + $0x10] sm:$0xff]
        %v276 = vld [vmem:[%s230 + $0x18] sm:$0xff]
        %v277 = vld [vmem:[%s230 + $0x20] sm:$0xff]
        %v278 = vld [vmem:[%s230 + $0x28] sm:$0xff]
        %v279 = vld [vmem:[%s230 + $0x30] sm:$0xff]
        %v280 = vld [vmem:[%s230 + $0x38] sm:$0xff]
        %v281 = vld [vmem:[%s230 + $0x40] sm:$0xff]
        %v282 = vld [vmem:[%s230 + $0x48] sm:$0xff]
        %v283 = vld [vmem:[%s230 + $0x50] sm:$0xff]
        %v284 = vld [vmem:[%s230 + $0x58] sm:$0xff]
        %v285 = vld [vmem:[%s230 + $0x60] sm:$0xff]
        %v286 = vld [vmem:[%s230 + $0x68] sm:$0xff]
        %v287 = vld [vmem:[%s230 + $0x70] sm:$0xff]
        %v288 = vld [vmem:[%s230 + $0x78] sm:$0xff]
        %v289 = vld [vmem:[%s230 + $0x80] sm:$0xff]
        %v290 = vld [vmem:[%s230 + $0x88] sm:$0xff]
        %v291 = vld [vmem:[%s230 + $0x90] sm:$0xff]
        %v292 = vld [vmem:[%s230 + $0x98] sm:$0xff]
        %v293 = vld [vmem:[%s230 + $0xa0] sm:$0xff]
        %v294 = vld [vmem:[%s230 + $0xa8] sm:$0xff]
        %v295 = vld [vmem:[%s230 + $0xb0] sm:$0xff]
        %v296 = vld [vmem:[%s230 + $0xb8] sm:$0xff]
        %v297 = vld [vmem:[%s230 + $0xc0] sm:$0xff]
        %v298 = vld [vmem:[%s230 + $0xc8] sm:$0xff]
        %v299 = vld [vmem:[%s230 + $0xd0] sm:$0xff]
        %v300 = vld [vmem:[%s230 + $0xd8] sm:$0xff]
        %v301 = vld [vmem:[%s230 + $0xe0] sm:$0xff]
        %v302 = vld [vmem:[%s230 + $0xe8] sm:$0xff]
        %v303 = vld [vmem:[%s230 + $0xf0] sm:$0xff]
        %v304 = vld [vmem:[%s230 + $0xf8] sm:$0xff]
        %v305 = vld [vmem:[%s205] sm:$0xff]
        %v306 = vld [vmem:[%s205 + $0x8] sm:$0xff]
        %v307 = vld [vmem:[%s205 + $0x10] sm:$0xff]
        %v308 = vld [vmem:[%s205 + $0x18] sm:$0xff]
        %v309 = vld [vmem:[%s205 + $0x20] sm:$0xff]
        %v310 = vld [vmem:[%s205 + $0x28] sm:$0xff]
        %v311 = vld [vmem:[%s205 + $0x30] sm:$0xff]
        %v312 = vld [vmem:[%s205 + $0x38] sm:$0xff]
        %v313 = vld [vmem:[%s205 + $0x40] sm:$0xff]
        %v314 = vld [vmem:[%s205 + $0x48] sm:$0xff]
        %v315 = vld [vmem:[%s205 + $0x50] sm:$0xff]
        %v316 = vld [vmem:[%s205 + $0x58] sm:$0xff]
        %v317 = vld [vmem:[%s205 + $0x60] sm:$0xff]
        %v318 = vld [vmem:[%s205 + $0x68] sm:$0xff]
        %v319 = vld [vmem:[%s205 + $0x70] sm:$0xff]
        %v320 = vld [vmem:[%s205 + $0x78] sm:$0xff]
        %v321 = vld [vmem:[%s205 + $0x80] sm:$0xff]
        %v322 = vld [vmem:[%s205 + $0x88] sm:$0xff]
        %v323 = vld [vmem:[%s205 + $0x90] sm:$0xff]
        %v324 = vld [vmem:[%s205 + $0x98] sm:$0xff]
        %v325 = vld [vmem:[%s205 + $0xa0] sm:$0xff]
        %v326 = vld [vmem:[%s205 + $0xa8] sm:$0xff]
        %v327 = vld [vmem:[%s205 + $0xb0] sm:$0xff]
        %v328 = vld [vmem:[%s205 + $0xb8] sm:$0xff]
        %v329 = vld [vmem:[%s205 + $0xc0] sm:$0xff]
        %v330 = vld [vmem:[%s205 + $0xc8] sm:$0xff]
        %v331 = vld [vmem:[%s205 + $0xd0] sm:$0xff]
        %v332 = vld [vmem:[%s205 + $0xd8] sm:$0xff]
        %v333 = vld [vmem:[%s205 + $0xe0] sm:$0xff]
        %v334 = vld [vmem:[%s205 + $0xe8] sm:$0xff]
        %v335 = vld [vmem:[%s205 + $0xf0] sm:$0xff]
        %v336 = vld [vmem:[%s205 + $0xf8] sm:$0xff]
        %v337 = vld [vmem:[%s196] sm:$0xff]
        %v338 = vld [vmem:[%s196 + $0x8] sm:$0xff]
        %v339 = vld [vmem:[%s196 + $0x10] sm:$0xff]
        %v340 = vld [vmem:[%s196 + $0x18] sm:$0xff]
        %v341 = vld [vmem:[%s196 + $0x20] sm:$0xff]
        %v342 = vld [vmem:[%s196 + $0x28] sm:$0xff]
        %v343 = vld [vmem:[%s196 + $0x30] sm:$0xff]
        %v344 = vld [vmem:[%s196 + $0x38] sm:$0xff]
        %v345 = vld [vmem:[%s196 + $0x40] sm:$0xff]
        %v346 = vld [vmem:[%s196 + $0x48] sm:$0xff]
        %v347 = vld [vmem:[%s196 + $0x50] sm:$0xff]
        %v348 = vld [vmem:[%s196 + $0x58] sm:$0xff]
        %v349 = vld [vmem:[%s196 + $0x60] sm:$0xff]
        %v350 = vld [vmem:[%s196 + $0x68] sm:$0xff]
        %v351 = vld [vmem:[%s196 + $0x70] sm:$0xff]
        %v352 = vld [vmem:[%s196 + $0x78] sm:$0xff]
        %v385 = vunpack.c.l.b16 %v305
        %v386 = vunpack.c.h.b16 %v305
        %v387 = vunpack.c.l.b16 %v306
        %v388 = vunpack.c.h.b16 %v306
        %v389 = vunpack.c.l.b16 %v307
        %v390 = vunpack.c.h.b16 %v307
        %v391 = vunpack.c.l.b16 %v308
        %v392 = vunpack.c.h.b16 %v308
        %v393 = vunpack.c.l.b16 %v309
        %v394 = vunpack.c.h.b16 %v309
        %v395 = vunpack.c.l.b16 %v310
        %v396 = vunpack.c.h.b16 %v310
        %v397 = vunpack.c.l.b16 %v311
        %v398 = vunpack.c.h.b16 %v311
        %v399 = vunpack.c.l.b16 %v312
        %v400 = vunpack.c.h.b16 %v312
        %v401 = vunpack.c.l.b16 %v313
        %v402 = vunpack.c.h.b16 %v313
        %v403 = vunpack.c.l.b16 %v314
        %v404 = vunpack.c.h.b16 %v314
        %v405 = vunpack.c.l.b16 %v315
        %v406 = vunpack.c.h.b16 %v315
        %v407 = vunpack.c.l.b16 %v316
        %v408 = vunpack.c.h.b16 %v316
        %v409 = vunpack.c.l.b16 %v317
        %v410 = vunpack.c.h.b16 %v317
        %v411 = vunpack.c.l.b16 %v318
        %v412 = vunpack.c.h.b16 %v318
        %v413 = vunpack.c.l.b16 %v319
        %v414 = vunpack.c.h.b16 %v319
        %v415 = vunpack.c.l.b16 %v320
        %v416 = vunpack.c.h.b16 %v320
        %v417 = vunpack.c.l.b16 %v321
        %v418 = vunpack.c.h.b16 %v321
        %v419 = vunpack.c.l.b16 %v322
        %v420 = vunpack.c.h.b16 %v322
        %v421 = vunpack.c.l.b16 %v323
        %v422 = vunpack.c.h.b16 %v323
        %v423 = vunpack.c.l.b16 %v324
        %v424 = vunpack.c.h.b16 %v324
        %v425 = vunpack.c.l.b16 %v325
        %v426 = vunpack.c.h.b16 %v325
        %v427 = vunpack.c.l.b16 %v326
        %v428 = vunpack.c.h.b16 %v326
        %v429 = vunpack.c.l.b16 %v327
        %v430 = vunpack.c.h.b16 %v327
        %v431 = vunpack.c.l.b16 %v328
        %v432 = vunpack.c.h.b16 %v328
        %v433 = vunpack.c.l.b16 %v329
        %v434 = vunpack.c.h.b16 %v329
        %v435 = vunpack.c.l.b16 %v330
        %v436 = vunpack.c.h.b16 %v330
        %v437 = vunpack.c.l.b16 %v331
        %v438 = vunpack.c.h.b16 %v331
        %v439 = vunpack.c.l.b16 %v332
        %v440 = vunpack.c.h.b16 %v332
        %v441 = vunpack.c.l.b16 %v333
        %v442 = vunpack.c.h.b16 %v333
        %v443 = vunpack.c.l.b16 %v334
        %v444 = vunpack.c.h.b16 %v334
        %v445 = vunpack.c.l.b16 %v335
        %v446 = vunpack.c.h.b16 %v335
        %v447 = vunpack.c.l.b16 %v336
        %v448 = vunpack.c.h.b16 %v336
        %v449 = vpack.c.b16 %v387, %v385
        %v450 = vpack.c.b16 %v388, %v386
        %v451 = vpack.c.b16 %v391, %v389
        %v452 = vpack.c.b16 %v392, %v390
        %v453 = vpack.c.b16 %v395, %v393
        %v454 = vpack.c.b16 %v396, %v394
        %v455 = vpack.c.b16 %v399, %v397
        %v456 = vpack.c.b16 %v400, %v398
        %v457 = vpack.c.b16 %v403, %v401
        %v458 = vpack.c.b16 %v404, %v402
        %v459 = vpack.c.b16 %v407, %v405
        %v460 = vpack.c.b16 %v408, %v406
        %v461 = vpack.c.b16 %v411, %v409
        %v462 = vpack.c.b16 %v412, %v410
        %v463 = vpack.c.b16 %v415, %v413
        %v464 = vpack.c.b16 %v416, %v414
        %v465 = vpack.c.b16 %v419, %v417
        %v466 = vpack.c.b16 %v420, %v418
        %v467 = vpack.c.b16 %v423, %v421
        %v468 = vpack.c.b16 %v424, %v422
        %v469 = vpack.c.b16 %v427, %v425
        %v470 = vpack.c.b16 %v428, %v426
        %v471 = vpack.c.b16 %v431, %v429
        %v472 = vpack.c.b16 %v432, %v430
        %v473 = vpack.c.b16 %v435, %v433
        %v474 = vpack.c.b16 %v436, %v434
        %v475 = vpack.c.b16 %v439, %v437
        %v476 = vpack.c.b16 %v440, %v438
        %v477 = vpack.c.b16 %v443, %v441
        %v478 = vpack.c.b16 %v444, %v442
        %v479 = vpack.c.b16 %v447, %v445
        %v480 = vpack.c.b16 %v448, %v446
        %v529 = vunpack.c.l.b16 %v337
        %v530 = vunpack.c.h.b16 %v337
        %v531 = vunpack.c.l.b16 %v338
        %v532 = vunpack.c.h.b16 %v338
        %v533 = vunpack.c.l.b16 %v339
        %v534 = vunpack.c.h.b16 %v339
        %v535 = vunpack.c.l.b16 %v340
        %v536 = vunpack.c.h.b16 %v340
        %v537 = vunpack.c.l.b16 %v341
        %v538 = vunpack.c.h.b16 %v341
        %v539 = vunpack.c.l.b16 %v342
        %v540 = vunpack.c.h.b16 %v342
        %v541 = vunpack.c.l.b16 %v343
        %v542 = vunpack.c.h.b16 %v343
        %v543 = vunpack.c.l.b16 %v344
        %v544 = vunpack.c.h.b16 %v344
        %v545 = vunpack.c.l.b16 %v345
        %v546 = vunpack.c.h.b16 %v345
        %v547 = vunpack.c.l.b16 %v346
        %v548 = vunpack.c.h.b16 %v346
        %v549 = vunpack.c.l.b16 %v347
        %v550 = vunpack.c.h.b16 %v347
        %v551 = vunpack.c.l.b16 %v348
        %v552 = vunpack.c.h.b16 %v348
        %v553 = vunpack.c.l.b16 %v349
        %v554 = vunpack.c.h.b16 %v349
        %v555 = vunpack.c.l.b16 %v350
        %v556 = vunpack.c.h.b16 %v350
        %v557 = vunpack.c.l.b16 %v351
        %v558 = vunpack.c.h.b16 %v351
        %v559 = vunpack.c.l.b16 %v352
        %v560 = vunpack.c.h.b16 %v352
        %v561 = vpack.c.b16 %v531, %v529
        %v562 = vpack.c.b16 %v532, %v530
        %v563 = vpack.c.b16 %v535, %v533
        %v564 = vpack.c.b16 %v536, %v534
        %v565 = vpack.c.b16 %v539, %v537
        %v566 = vpack.c.b16 %v540, %v538
        %v567 = vpack.c.b16 %v543, %v541
        %v568 = vpack.c.b16 %v544, %v542
        %v569 = vpack.c.b16 %v547, %v545
        %v570 = vpack.c.b16 %v548, %v546
        %v571 = vpack.c.b16 %v551, %v549
        %v572 = vpack.c.b16 %v552, %v550
        %v573 = vpack.c.b16 %v555, %v553
        %v574 = vpack.c.b16 %v556, %v554
        %v575 = vpack.c.b16 %v559, %v557
        %v576 = vpack.c.b16 %v560, %v558
        %593 = vmatprep.subr.bf16.mxu0 %v562
        %594 = vmatpush1.bf16.xpose.msra.mxu0 %v561
        %595 = vmatprep.subr.bf16.mxu0 %v564
        %596 = vmatpush1.bf16.xpose.msra.mxu0 %v563
        %597 = vmatprep.subr.bf16.mxu0 %v566
        %598 = vmatpush1.bf16.xpose.msra.mxu0 %v565
        %599 = vmatprep.subr.bf16.mxu0 %v568
        %600 = vmatpush1.bf16.xpose.msra.mxu0 %v567
        %601 = vmatprep.subr.bf16.mxu0 %v570
        %602 = vmatpush1.bf16.xpose.msra.mxu0 %v569
        %603 = vmatprep.subr.bf16.mxu0 %v572
        %604 = vmatpush1.bf16.xpose.msra.mxu0 %v571
        %605 = vmatprep.subr.bf16.mxu0 %v574
        %606 = vmatpush1.bf16.xpose.msra.mxu0 %v573
        %607 = vmatprep.subr.bf16.mxu0 %v576
        %608 = vmatpush1.bf16.xpose.msra.mxu0 %v575
        %609 = vmatprep.subr.bf16.mxu0 0
        %610 = vmatpush1.bf16.xpose.msra.mxu0 0
        %611 = vmatprep.subr.bf16.mxu0 0
        %612 = vmatpush1.bf16.xpose.msra.mxu0 0
        %613 = vmatprep.subr.bf16.mxu0 0
        %614 = vmatpush1.bf16.xpose.msra.mxu0 0
        %615 = vmatprep.subr.bf16.mxu0 0
        %616 = vmatpush1.bf16.xpose.msra.mxu0 0
        %617 = vmatprep.subr.bf16.mxu0 0
        %618 = vmatpush1.bf16.xpose.msra.mxu0 0
        %619 = vmatprep.subr.bf16.mxu0 0
        %620 = vmatpush1.bf16.xpose.msra.mxu0 0
        %621 = vmatprep.subr.bf16.mxu0 0
        %622 = vmatpush1.bf16.xpose.msra.mxu0 0
        %623 = vmatprep.subr.bf16.mxu0 0
        %624 = vmatpush1.bf16.xpose.msra.mxu0 0
        %625 = vmatprep.mubr.bf16.mxu0 %v450
        %626 = vmatmul.mubr.bf16.gmra.mrb[0].mxu0 %v449
        %v627 = vpop.f32.mrb[0].mxu0
        %v628 = vadd.f32 0.0, %v627
        %v629 = vpop.f32.mrb[0].mxu0
        %v630 = vpop.f32.mrb[0].mxu0
        %v631 = vadd.f32 0.0, %v630
        %v632 = vpop.f32.mrb[0].mxu0
        %633 = vmatprep.mubr.bf16.mxu0 %v452
        %634 = vmatmul.mubr.bf16.gmra.mrb[0].mxu0 %v451
        %v635 = vpop.f32.mrb[0].mxu0
        %v636 = vadd.f32 0.0, %v635
        %v637 = vpop.f32.mrb[0].mxu0
        %v638 = vpop.f32.mrb[0].mxu0
        %v639 = vadd.f32 0.0, %v638
        %v640 = vpop.f32.mrb[0].mxu0
        %641 = vmatprep.mubr.bf16.mxu0 %v454
        %642 = vmatmul.mubr.bf16.gmra.mrb[0].mxu0 %v453
        %v643 = vpop.f32.mrb[0].mxu0
        %v644 = vadd.f32 0.0, %v643
        %v645 = vpop.f32.mrb[0].mxu0
        %v646 = vpop.f32.mrb[0].mxu0
        %v647 = vadd.f32 0.0, %v646
        %v648 = vpop.f32.mrb[0].mxu0
        %649 = vmatprep.mubr.bf16.mxu0 %v456
        %650 = vmatmul.mubr.bf16.gmra.mrb[0].mxu0 %v455
        %v651 = vpop.f32.mrb[0].mxu0
        %v652 = vadd.f32 0.0, %v651
        %v653 = vpop.f32.mrb[0].mxu0
        %v654 = vpop.f32.mrb[0].mxu0
        %v655 = vadd.f32 0.0, %v654
        %v656 = vpop.f32.mrb[0].mxu0
        %657 = vmatprep.mubr.bf16.mxu0 %v458
        %658 = vmatmul.mubr.bf16.gmra.mrb[0].mxu0 %v457
        %v659 = vpop.f32.mrb[0].mxu0
        %v660 = vadd.f32 0.0, %v659
        %v661 = vpop.f32.mrb[0].mxu0
        %v662 = vpop.f32.mrb[0].mxu0
        %v663 = vadd.f32 0.0, %v662
        %v664 = vpop.f32.mrb[0].mxu0
        %665 = vmatprep.mubr.bf16.mxu0 %v460
        %666 = vmatmul.mubr.bf16.gmra.mrb[0].mxu0 %v459
        %v667 = vpop.f32.mrb[0].mxu0
        %v668 = vadd.f32 0.0, %v667
        %v669 = vpop.f32.mrb[0].mxu0
        %v670 = vpop.f32.mrb[0].mxu0
        %v671 = vadd.f32 0.0, %v670
        %v672 = vpop.f32.mrb[0].mxu0
        %673 = vmatprep.mubr.bf16.mxu0 %v462
        %674 = vmatmul.mubr.bf16.gmra.mrb[0].mxu0 %v461
        %v675 = vpop.f32.mrb[0].mxu0
        %v676 = vadd.f32 0.0, %v675
        %v677 = vpop.f32.mrb[0].mxu0
        %v678 = vpop.f32.mrb[0].mxu0
        %v679 = vadd.f32 0.0, %v678
        %v680 = vpop.f32.mrb[0].mxu0
        %681 = vmatprep.mubr.bf16.mxu0 %v464
        %682 = vmatmul.mubr.bf16.gmra.mrb[0].mxu0 %v463
        %v683 = vpop.f32.mrb[0].mxu0
        %v684 = vadd.f32 0.0, %v683
        %v685 = vpop.f32.mrb[0].mxu0
        %v686 = vpop.f32.mrb[0].mxu0
        %v687 = vadd.f32 0.0, %v686
        %v688 = vpop.f32.mrb[0].mxu0
        %689 = vmatprep.mubr.bf16.mxu0 %v466
        %690 = vmatmul.mubr.bf16.gmra.mrb[0].mxu0 %v465
        %v691 = vpop.f32.mrb[0].mxu0
        %v692 = vadd.f32 0.0, %v691
        %v693 = vpop.f32.mrb[0].mxu0
        %v694 = vpop.f32.mrb[0].mxu0
        %v695 = vadd.f32 0.0, %v694
        %v696 = vpop.f32.mrb[0].mxu0
        %697 = vmatprep.mubr.bf16.mxu0 %v468
        %698 = vmatmul.mubr.bf16.gmra.mrb[0].mxu0 %v467
        %v699 = vpop.f32.mrb[0].mxu0
        %v700 = vadd.f32 0.0, %v699
        %v701 = vpop.f32.mrb[0].mxu0
        %v702 = vpop.f32.mrb[0].mxu0
        %v703 = vadd.f32 0.0, %v702
        %v704 = vpop.f32.mrb[0].mxu0
        %705 = vmatprep.mubr.bf16.mxu0 %v470
        %706 = vmatmul.mubr.bf16.gmra.mrb[0].mxu0 %v469
        %v707 = vpop.f32.mrb[0].mxu0
        %v708 = vadd.f32 0.0, %v707
        %v709 = vpop.f32.mrb[0].mxu0
        %v710 = vpop.f32.mrb[0].mxu0
        %v711 = vadd.f32 0.0, %v710
        %v712 = vpop.f32.mrb[0].mxu0
        %713 = vmatprep.mubr.bf16.mxu0 %v472
        %714 = vmatmul.mubr.bf16.gmra.mrb[0].mxu0 %v471
        %v715 = vpop.f32.mrb[0].mxu0
        %v716 = vadd.f32 0.0, %v715
        %v717 = vpop.f32.mrb[0].mxu0
        %v718 = vpop.f32.mrb[0].mxu0
        %v719 = vadd.f32 0.0, %v718
        %v720 = vpop.f32.mrb[0].mxu0
        %721 = vmatprep.mubr.bf16.mxu0 %v474
        %722 = vmatmul.mubr.bf16.gmra.mrb[0].mxu0 %v473
        %v723 = vpop.f32.mrb[0].mxu0
        %v724 = vadd.f32 0.0, %v723
        %v725 = vpop.f32.mrb[0].mxu0
        %v726 = vpop.f32.mrb[0].mxu0
        %v727 = vadd.f32 0.0, %v726
        %v728 = vpop.f32.mrb[0].mxu0
        %729 = vmatprep.mubr.bf16.mxu0 %v476
        %730 = vmatmul.mubr.bf16.gmra.mrb[0].mxu0 %v475
        %v731 = vpop.f32.mrb[0].mxu0
        %v732 = vadd.f32 0.0, %v731
        %v733 = vpop.f32.mrb[0].mxu0
        %v734 = vpop.f32.mrb[0].mxu0
        %v735 = vadd.f32 0.0, %v734
        %v736 = vpop.f32.mrb[0].mxu0
        %737 = vmatprep.mubr.bf16.mxu0 %v478
        %738 = vmatmul.mubr.bf16.gmra.mrb[0].mxu0 %v477
        %v739 = vpop.f32.mrb[0].mxu0
        %v740 = vadd.f32 0.0, %v739
        %v741 = vpop.f32.mrb[0].mxu0
        %v742 = vpop.f32.mrb[0].mxu0
        %v743 = vadd.f32 0.0, %v742
        %v744 = vpop.f32.mrb[0].mxu0
        %745 = vmatprep.mubr.bf16.mxu0 %v480
        %746 = vmatmul.mubr.bf16.gmra.mrb[0].mxu0 %v479
        %v747 = vpop.f32.mrb[0].mxu0
        %v748 = vadd.f32 0.0, %v747
        %v749 = vpop.f32.mrb[0].mxu0
        %v750 = vpop.f32.mrb[0].mxu0
        %v751 = vadd.f32 0.0, %v750
        %v752 = vpop.f32.mrb[0].mxu0
        %753 = vdwg.mxu0
        %v754 = vadd.f32 %v273, %v628
        %v755 = vadd.f32 %v274, %v631
        %v756 = vadd.f32 %v275, %v636
        %v757 = vadd.f32 %v276, %v639
        %v758 = vadd.f32 %v277, %v644
        %v759 = vadd.f32 %v278, %v647
        %v760 = vadd.f32 %v279, %v652
        %v761 = vadd.f32 %v280, %v655
        %v762 = vadd.f32 %v281, %v660
        %v763 = vadd.f32 %v282, %v663
        %v764 = vadd.f32 %v283, %v668
        %v765 = vadd.f32 %v284, %v671
        %v766 = vadd.f32 %v285, %v676
        %v767 = vadd.f32 %v286, %v679
        %v768 = vadd.f32 %v287, %v684
        %v769 = vadd.f32 %v288, %v687
        %v770 = vadd.f32 %v289, %v692
        %v771 = vadd.f32 %v290, %v695
        %v772 = vadd.f32 %v291, %v700
        %v773 = vadd.f32 %v292, %v703
        %v774 = vadd.f32 %v293, %v708
        %v775 = vadd.f32 %v294, %v711
        %v776 = vadd.f32 %v295, %v716
        %v777 = vadd.f32 %v296, %v719
        %v778 = vadd.f32 %v297, %v724
        %v779 = vadd.f32 %v298, %v727
        %v780 = vadd.f32 %v299, %v732
        %v781 = vadd.f32 %v300, %v735
        %v782 = vadd.f32 %v301, %v740
        %v783 = vadd.f32 %v302, %v743
        %v784 = vadd.f32 %v303, %v748
        %v785 = vadd.f32 %v304, %v751
        %786 = vst [vmem:[%s230] sm:$0xff] %v754
        %787 = vst [vmem:[%s230 + $0x8] sm:$0xff] %v755
        %788 = vst [vmem:[%s230 + $0x10] sm:$0xff] %v756
        %789 = vst [vmem:[%s230 + $0x18] sm:$0xff] %v757
        %790 = vst [vmem:[%s230 + $0x20] sm:$0xff] %v758
        %791 = vst [vmem:[%s230 + $0x28] sm:$0xff] %v759
        %792 = vst [vmem:[%s230 + $0x30] sm:$0xff] %v760
        %793 = vst [vmem:[%s230 + $0x38] sm:$0xff] %v761
        %794 = vst [vmem:[%s230 + $0x40] sm:$0xff] %v762
        %795 = vst [vmem:[%s230 + $0x48] sm:$0xff] %v763
        %796 = vst [vmem:[%s230 + $0x50] sm:$0xff] %v764
        %797 = vst [vmem:[%s230 + $0x58] sm:$0xff] %v765
        %798 = vst [vmem:[%s230 + $0x60] sm:$0xff] %v766
        %799 = vst [vmem:[%s230 + $0x68] sm:$0xff] %v767
        %800 = vst [vmem:[%s230 + $0x70] sm:$0xff] %v768
        %801 = vst [vmem:[%s230 + $0x78] sm:$0xff] %v769
        %802 = vst [vmem:[%s230 + $0x80] sm:$0xff] %v770
        %803 = vst [vmem:[%s230 + $0x88] sm:$0xff] %v771
        %804 = vst [vmem:[%s230 + $0x90] sm:$0xff] %v772
        %805 = vst [vmem:[%s230 + $0x98] sm:$0xff] %v773
        %806 = vst [vmem:[%s230 + $0xa0] sm:$0xff] %v774
        %807 = vst [vmem:[%s230 + $0xa8] sm:$0xff] %v775
        %808 = vst [vmem:[%s230 + $0xb0] sm:$0xff] %v776
        %809 = vst [vmem:[%s230 + $0xb8] sm:$0xff] %v777
        %810 = vst [vmem:[%s230 + $0xc0] sm:$0xff] %v778
        %811 = vst [vmem:[%s230 + $0xc8] sm:$0xff] %v779
        %812 = vst [vmem:[%s230 + $0xd0] sm:$0xff] %v780
        %813 = vst [vmem:[%s230 + $0xd8] sm:$0xff] %v781
        %814 = vst [vmem:[%s230 + $0xe0] sm:$0xff] %v782
        %815 = vst [vmem:[%s230 + $0xe8] sm:$0xff] %v783
        %816 = vst [vmem:[%s230 + $0xf0] sm:$0xff] %v784
        %817 = vst [vmem:[%s230 + $0xf8] sm:$0xff] %v785
        %s818 = sand.u32 %s105, 1
        %s819 = scalar_lea.sflag [#allocation6], %s818
        %s820 = sand.u32 %s105, 1
        %s821 = smul.addr %s820, 256
        %s822 = scalar_lea.vmem [#allocation9], %s821
        // Predicated region
        $region41: #{tpu_custom_call.1} parent=27 // pred_check
          %p823 = pneg %p115
        $region42: #{tpu_custom_call.1} parent=27 // pred_check_branch
          %825 = sbr.rel (%p823) target = $region44
        $region43: #{tpu_custom_call.1} parent=27 // pred_region
          %s826 = smul.u32 32, %s31
          %s828 = ssub.s32 4096, 4096
          %829 = vsyncadd %s819, %s828
          %s830 = smul.addr %s826, 128
          %s831 = scalar_lea.hbm %s3, %s830
          %s832 = sshll.u32 %s822, 4
          %s833 = int_to_ptr.vmem [resolvable:$true] %s832
          %838 = dma.vmem_to_hbm [thread:$0]  %s833, 4096, %s831, %s819, 128, 128, 8
        $region44: #{tpu_custom_call.1} parent=27 // pred_fallthru
          _
      $region28: #{tpu_custom_call.1} parent=5 // pred_fallthru
        _
      %p839 = scmp.le.s32.totalorder 2, %s22
      // Predicated region
      $region45: #{tpu_custom_call.1} parent=5 // pred_check
        %p840 = pneg %p839
      $region46: #{tpu_custom_call.1} parent=5 // pred_check_branch
        %842 = sbr.rel (%p840) target = $region48
      $region47: #{tpu_custom_call.1} parent=5 // pred_region
        %s843 = ssub.s32 %s22, 2
        // Predicated region
        $region49: #{tpu_custom_call.1} parent=47 // pred_check
          %p844 = pneg %p121
        $region50: #{tpu_custom_call.1} parent=47 // pred_check_branch
          %846 = sbr.rel (%p844) target = $region52
        $region51: #{tpu_custom_call.1} parent=47 // pred_region
          %s847 = sand.u32 %s106, 1
          %s848 = scalar_lea.sflag [#allocation6], %s847
          %s849 = sand.u32 %s106, 1
          %s850 = smul.addr %s849, 256
          %s851 = scalar_lea.vmem [#allocation9], %s850
          %852 = dma.done %s848, 4096
        $region52: #{tpu_custom_call.1} parent=47 // pred_fallthru
          _
      $region48: #{tpu_custom_call.1} parent=5 // pred_fallthru
        _
    $region6: #{tpu_custom_call.1} parent=1 // loop_footer
      %s26 = sadd.s32 1, %s22
    $region7: #{tpu_custom_call.1} parent=1 // loop_footer_branch
      %21 = sbr.rel target = $region3
    $region8: #{tpu_custom_call.1} parent=1 // loop_exit
      _
    %853 = vsyncpa [#allocation5], 1
    %s854 = scalar_lea.sflag [#allocation5], 1
    %855 = vsyncpa %s854, 1
    %856 = vsyncpa [#allocation8], 1
    %s857 = scalar_lea.sflag [#allocation8], 1
    %858 = vsyncpa %s857, 1
    %859 = vsyncpa [#allocation6], 1
    %s860 = scalar_lea.sflag [#allocation6], 1
    %861 = vsyncpa %s860, 1

</llo_original>
